<compile_context>
chip_gen: v6e
topology: v6e:2x2x1
jax: 0.10.0
libtpu: 0.0.40
codegen_flags: <defaults>
</compile_context>

<pallas_src>
import functools

import jax
import jax.numpy as jnp
from jax.experimental import pallas as pl
from jax.experimental.pallas import tpu as pltpu


_LANE = 128
_TARGET_BLOCK_BYTES = 6 * 1024 * 1024   # per-block VMEM footprint target (in == out)
_VMEM_LIMIT_BYTES = 48 * 1024 * 1024    # < v7x 64 MiB physical, > 16/32 MiB scoped defaults
_SMALL_BYTES = 1 << 20                  # below ~1 MiB plain XLA is faster than a pallas_call


def _round_up(x: int, m: int) -> int:
    return -(-x // m) * m


def _sublane(dtype) -> int:
    # f32 -> 8, bf16/f16 -> 16, int8/fp8 -> 32 (packed sublanes)
    return {4: 8, 2: 16, 1: 32}.get(jnp.dtype(dtype).itemsize, 8)


def _binary_quant_kernel(w_ref, o_ref, *, inv_fan_in: float):
    """One (row_tile, F_pad) tile: clamp, per-row alpha, sign*alpha."""
    w = w_ref[...]
    # w_clamp=True -> clamp to [-1, 1]; stay in native dtype (bf16 VPU on v6e/v7x).
    w = jnp.clip(w, jnp.asarray(-1.0, w.dtype), jnp.asarray(1.0, w.dtype))
    # alpha = mean(|w|) over the true fan-in. Padded lanes are zero, so they do
    # not contribute to the sum; we divide by the *logical* fan-in (static).
    alpha = jnp.sum(jnp.abs(w).astype(jnp.float32), axis=1, keepdims=True) * inv_fan_in
    # Binary_weight_STE: sign(w) with sign(0) -> +1, fused with the alpha scale.
    out = jnp.where(w >= 0, alpha, -alpha)
    o_ref[...] = out.astype(o_ref.dtype)


def _reference(weight: jax.Array) -> jax.Array:
    """Pure-JAX reference of the PyTorch forward (W=2, alpha, clamp)."""
    w = jnp.clip(weight, -1.0, 1.0)
    O = w.shape[0]
    alpha = jnp.mean(jnp.abs(w).reshape(O, -1).astype(jnp.float32), axis=1)
    alpha = alpha.reshape((O,) + (1,) * (w.ndim - 1))
    out = jnp.where(w >= 0, alpha, -alpha)
    return out.astype(weight.dtype)


def binary_weight_quantizer(weight: jax.Array,
                            row_tile: int | None = None,
                            use_pallas: bool | None = None) -> jax.Array:
    """Pallas implementation of Binary_weight_quantizer.forward (W=2 path).

    Accepts 2D (O, I) or 4D (O, I, kH, kW) weights, returns same shape/dtype.
    """
    if weight.ndim not in (2, 4):
        raise ValueError(f"unexpected weight shape {weight.shape}")
    orig_shape = weight.shape
    O = orig_shape[0]
    w2d = weight.reshape(O, -1)
    F = w2d.shape[1]
    itemsize = jnp.dtype(weight.dtype).itemsize
    sub = _sublane(weight.dtype)
    F_pad = _round_up(F, _LANE)

    if use_pallas is None:
        # Tiny weights: launch + pipeline overhead dominates; let XLA fuse it.
        use_pallas = O * F * itemsize >= _SMALL_BYTES
    if F_pad * itemsize * sub > 16 * 1024 * 1024:
        # TODO(synk): fan-in too large for a single row-block; would need a
        # two-pass / accumulator-grid reduction over the fan-in axis.
        use_pallas = False

    if not use_pallas:
        return _reference(weight)

    O_sub = _round_up(O, sub)

    if row_tile is None:
        # Largest sublane-multiple row count whose block fits the VMEM budget.
        rows = _TARGET_BLOCK_BYTES // max(1, F_pad * itemsize)
        rows = max(sub, (rows // sub) * sub)
        row_tile = min(rows, O_sub)
        # Ensure >= 2 grid steps when possible so ("parallel",) can shard the
        # row axis across both TensorCores on v7x.
        if row_tile >= O_sub and O_sub >= 2 * sub:
            row_tile = _round_up(O_sub // 2, sub)
    else:
        # Validate / round user-supplied tile to the sublane multiple.
        row_tile = _round_up(max(1, min(int(row_tile), O_sub)), sub)

    grid_rows = pl.cdiv(O_sub, row_tile)
    O_pad = grid_rows * row_tile

    if (O_pad, F_pad) != (O, F):
        w2d = jnp.pad(w2d, ((0, O_pad - O), (0, F_pad - F)))

    kernel = functools.partial(_binary_quant_kernel, inv_fan_in=1.0 / float(F))

    out2d = pl.pallas_call(
        kernel,
        out_shape=jax.ShapeDtypeStruct((O_pad, F_pad), weight.dtype),
        grid_spec=pltpu.PrefetchScalarGridSpec(
            num_scalar_prefetch=0,
            grid=(grid_rows,),
            in_specs=[pl.BlockSpec((row_tile, F_pad), lambda i: (i, 0))],
            out_specs=pl.BlockSpec((row_tile, F_pad), lambda i: (i, 0)),
        ),
        compiler_params=pltpu.CompilerParams(
            dimension_semantics=("parallel",),
            vmem_limit_bytes=_VMEM_LIMIT_BYTES,
        ),
    )(w2d)

    if (O_pad, F_pad) != (O, F):
        out2d = out2d[:O, :F]
    return out2d.reshape(orig_shape)


if __name__ == "__main__":
    key = jax.random.PRNGKey(0)
    k1, k2, k3, k4 = jax.random.split(key, 4)

    # Conv-style weight (out_ch=16, in_ch=4, kH=3, kW=3); values beyond [-1, 1]
    # so the clamp path is exercised. Forced through the Pallas path to test
    # the lane/row padding (F=36 -> 128, O=16 -> two 8-row blocks).
    w_conv = jax.random.normal(k1, (16, 4, 3, 3), dtype=jnp.float32) * 1.5
    # Linear-style weight (out_features=16, in_features=32), forced Pallas.
    w_lin = jax.random.normal(k2, (16, 32), dtype=jnp.float32) * 1.5
    # Larger f32 weight with a non-128-multiple fan-in; takes the Pallas path
    # automatically (auto tile sizing + F padding 600 -> 640).
    w_big = jax.random.normal(k3, (512, 600), dtype=jnp.float32) * 1.5
    # bf16 weight: exercises the 16-row sublane multiple and bf16 compute path.
    w_bf16 = (jax.random.normal(k4, (256, 384), dtype=jnp.float32) * 1.5).astype(jnp.bfloat16)

    out_conv = jax.block_until_ready(binary_weight_quantizer(w_conv, use_pallas=True))
    out_lin = jax.block_until_ready(binary_weight_quantizer(w_lin, use_pallas=True))
    out_big = jax.block_until_ready(binary_weight_quantizer(w_big))
    out_bf16 = jax.block_until_ready(binary_weight_quantizer(w_bf16, use_pallas=True))
    # Tiny-weight fast path (pure XLA) still matches.
    out_conv_small = jax.block_until_ready(binary_weight_quantizer(w_conv))

    ref_conv = _reference(w_conv)
    ref_lin = _reference(w_lin)
    ref_big = _reference(w_big)
    ref_bf16 = _reference(w_bf16)

    assert out_conv.shape == w_conv.shape and out_conv.dtype == w_conv.dtype
    assert out_lin.shape == w_lin.shape and out_lin.dtype == w_lin.dtype
    assert out_big.shape == w_big.shape and out_big.dtype == w_big.dtype
    assert out_bf16.shape == w_bf16.shape and out_bf16.dtype == w_bf16.dtype

    assert jnp.allclose(out_conv, ref_conv, atol=1e-5, rtol=1e-5)
    assert jnp.allclose(out_lin, ref_lin, atol=1e-5, rtol=1e-5)
    assert jnp.allclose(out_big, ref_big, atol=1e-5, rtol=1e-5)
    assert jnp.allclose(out_conv_small, ref_conv, atol=1e-5, rtol=1e-5)
    assert jnp.allclose(out_bf16.astype(jnp.float32), ref_bf16.astype(jnp.float32),
                        atol=1e-2, rtol=2e-2)

    print("KERNEL_OK")
</pallas_src>

<mosaic_0001>
module attributes {stable_mosaic.version = 11 : i64} {
  func.func @_binary_quant_kernel(%arg0: i32, %arg1: memref<8x128xf32, #tpu.memory_space<vmem>>, %arg2: memref<8x128xf32, #tpu.memory_space<vmem>>) attributes {dimension_semantics = [#tpu.dimension_semantics<parallel>], iteration_bounds = array<i64: 2>, scalar_prefetch = 0 : i64, scratch_operands = 0 : i64, tpu.core_type = #tpu.core_type<tc>, window_params = [{transform_indices = @transform_0, window_bounds = array<i64: 8, 128>}, {transform_indices = @transform_1, window_bounds = array<i64: 8, 128>}]} {
    %c0 = arith.constant 0 : index
    %c0_0 = arith.constant 0 : index
    %0 = vector.load %arg1[%c0, %c0_0] : memref<8x128xf32, #tpu.memory_space<vmem>>, vector<8x128xf32>
    %cst = arith.constant -1.000000e+00 : f32
    %cst_1 = arith.constant 1.000000e+00 : f32
    %1 = vector.broadcast %cst : f32 to vector<8x128xf32>
    %2 = arith.maximumf %1, %0 : vector<8x128xf32>
    %3 = vector.broadcast %cst_1 : f32 to vector<8x128xf32>
    %4 = arith.minimumf %3, %2 : vector<8x128xf32>
    %5 = math.absf %4 : vector<8x128xf32>
    %cst_2 = arith.constant dense<0.000000e+00> : vector<8xf32>
    %6 = vector.multi_reduction <add>, %5, %cst_2 [1] : vector<8x128xf32> to vector<8xf32>
    %7 = vector.shape_cast %6 : vector<8xf32> to vector<8x1xf32>
    %cst_3 = arith.constant 0.027777778 : f32
    %8 = vector.broadcast %cst_3 : f32 to vector<8x1xf32>
    %9 = arith.mulf %7, %8 : vector<8x1xf32>
    %cst_4 = arith.constant 0.000000e+00 : f32
    %10 = vector.broadcast %cst_4 : f32 to vector<8x128xf32>
    %11 = arith.cmpf oge, %4, %10 : vector<8x128xf32>
    %cst_5 = arith.constant 0.000000e+00 : f32
    %12 = vector.broadcast %cst_5 : f32 to vector<8x1xf32>
    %13 = arith.subf %12, %9 : vector<8x1xf32>
    %14 = vector.shape_cast %9 : vector<8x1xf32> to vector<8x1xf32>
    %15 = vector.broadcast %14 : vector<8x1xf32> to vector<8x128xf32>
    %16 = vector.shape_cast %13 : vector<8x1xf32> to vector<8x1xf32>
    %17 = vector.broadcast %16 : vector<8x1xf32> to vector<8x128xf32>
    %18 = arith.select %11, %15, %17 : vector<8x128xi1>, vector<8x128xf32>
    %c0_6 = arith.constant 0 : index
    %c0_7 = arith.constant 0 : index
    %19 = vector.load %arg2[%c0_6, %c0_7] : memref<8x128xf32, #tpu.memory_space<vmem>>, vector<8x128xf32>
    tpu.vector_store %arg2[%c0_6, %c0_7], %18 {strides = array<i32>} : memref<8x128xf32, #tpu.memory_space<vmem>>, vector<8x128xf32>,
    return
  }
  func.func @transform_0(%arg0: i32) -> (i32, i32) {
    %c0_i32 = arith.constant 0 : i32
    %c0_i32_0 = arith.constant 0 : i32
    return %arg0, %c0_i32 : i32, i32
  }
  func.func @transform_1(%arg0: i32) -> (i32, i32) {
    %c0_i32 = arith.constant 0 : i32
    %c0_i32_0 = arith.constant 0 : i32
    return %arg0, %c0_i32 : i32, i32
  }
}

</mosaic_0001>

<llo_original>
// kernel: tpu_custom_call.1
$region0: #{tpu_custom_call.1}
  #allocation0 [shape = 'u32[]', space=smem, size = 0x4, offset = 0x4, fixed_abs, tag = 'smem constant byte address 0x4 - core index']
  #allocation1 [shape = 'u32[144,128]{1,0:T(1,128)}', space=vmem, size = 0x12000, scoped, tag = 'internal scratch']
  %s0 = inlined_call_operand.hbm [shape: f32[16,128], index: 0, kind: input, shape index: {}]
  %s1 = inlined_call_operand.hbm [shape: f32[16,128], index: 1, kind: output, shape index: {}]
  %s2 = sld [smem:[#allocation0]]
  $region41: #{tpu_custom_call.1} parent=0
    _
  %s4 = ssub.s32 1, %s2
  %s5 = scalar_select 0, %s4, %s2
  $region1: #{tpu_custom_call.1} parent=0
    #allocation2 [shape = 'u8[8192]{0}', space=vmem, size = 0x2000, scoped, tag = 'input window, operand 0']
    #allocation3 [shape = 's32[2]{0}', space=sflag, size = 0x8, scoped, tag = 'scoped memory for tpu_custom_call.1']
    #allocation4 [shape = 's32[2]{0}', space=sflag, size = 0x8, scoped, tag = 'scoped memory for tpu_custom_call.1']
    #allocation5 [shape = 'u8[8192]{0}', space=vmem, size = 0x2000, scoped, tag = 'output window, operand 0']
    %6 = vsyncpa [#allocation3], 0
    %s7 = scalar_lea.sflag [#allocation3], 1
    %8 = vsyncpa %s7, 0
    %9 = vsyncpa [#allocation4], 0
    %s10 = scalar_lea.sflag [#allocation4], 1
    %11 = vsyncpa %s10, 0
    loop: start=0, step=1, limit=4
    $region2: #{tpu_custom_call.1} parent=1 // loop_pre_header
      _
    $region3: #{tpu_custom_call.1} parent=1 // loop_header
      %s13 = sphi 0, %s17
      %p14 = scmp.ge.s32.totalorder %s13, 4
      %s23 = sphi 0, %s25
      %s26 = sphi 0, %s23
      %s27 = sphi 0, %s26
      %s43 = sphi 0, %s27
      %s49 = sphi 0, %s51
      %s52 = sphi 0, %s49
      %s53 = sphi 0, %s52
      %s69 = sphi 0, %s53
    $region4: #{tpu_custom_call.1} parent=1 // loop_header_branch
      %16 = sbr.rel (%p14) target = $region8
    $region5: #{tpu_custom_call.1} parent=1 // loop_body
      %s18 = ssub.s32 %s13, 1
      %s19 = ssub.s32 %s13, 2
      %s20 = sadd.s32 %s13, 1
      %s21 = ssub.s32 %s13, %s20
      %p22 = scmp.eq.s32.totalorder %s21, 0
      %s24 = sadd.s32 %s23, 1
      %s25 = scalar_select %p22, %s23, %s24
      %p28 = pneg %p22
      %p29 = scmp.eq.s32.totalorder %s13, 1
      %p30 = por %p28, %p29
      %p31 = scmp.ne.s32.totalorder %s23, %s26
      %p32 = scmp.eq.s32.totalorder %s13, 0
      %p33 = por %p31, %p32
      %p34 = scmp.ne.s32.totalorder %s23, %s26
      %p35 = scmp.eq.s32.totalorder %s18, 1
      %p36 = por %p34, %p35
      %p37 = scmp.ne.s32.totalorder %s26, %s27
      %p38 = scmp.eq.s32.totalorder %s18, 0
      %p39 = por %p37, %p38
      %p40 = scmp.ne.s32.totalorder %s26, %s27
      %p41 = scmp.eq.s32.totalorder %s19, 1
      %p42 = por %p40, %p41
      %p44 = scmp.ne.s32.totalorder %s27, %s43
      %p45 = scmp.eq.s32.totalorder %s19, 0
      %p46 = por %p44, %p45
      %s47 = ssub.s32 %s13, %s20
      %p48 = scmp.eq.s32.totalorder %s47, 0
      %s50 = sadd.s32 %s49, 1
      %s51 = scalar_select %p48, %s49, %s50
      %p54 = pneg %p48
      %p55 = scmp.eq.s32.totalorder %s13, 1
      %p56 = por %p54, %p55
      %p57 = scmp.ne.s32.totalorder %s49, %s52
      %p58 = scmp.eq.s32.totalorder %s13, 0
      %p59 = por %p57, %p58
      %p60 = scmp.ne.s32.totalorder %s49, %s52
      %p61 = scmp.eq.s32.totalorder %s18, 1
      %p62 = por %p60, %p61
      %p63 = scmp.ne.s32.totalorder %s52, %s53
      %p64 = scmp.eq.s32.totalorder %s18, 0
      %p65 = por %p63, %p64
      %p66 = scmp.ne.s32.totalorder %s52, %s53
      %p67 = scmp.eq.s32.totalorder %s19, 1
      %p68 = por %p66, %p67
      %p70 = scmp.ne.s32.totalorder %s53, %s69
      %p71 = scmp.eq.s32.totalorder %s19, 0
      %p72 = por %p70, %p71
      %p73 = scmp.le.s32.totalorder 1, %s13
      %p74 = scmp.lt.s32.totalorder %s13, 3
      %p75 = pnand %p73, %p74
      %p76 = pneg %p75
      // Predicated region
      $region9: #{tpu_custom_call.1} parent=5 // pred_check
        _
      $region10: #{tpu_custom_call.1} parent=5 // pred_check_branch
        %78 = sbr.rel (%p75) target = $region12
      $region11: #{tpu_custom_call.1} parent=5 // pred_region
        %s79 = ssub.s32 %s13, 1
      $region12: #{tpu_custom_call.1} parent=5 // pred_fallthru
        _
      %p80 = scmp.lt.s32.totalorder %s13, 2
      // Predicated region
      $region13: #{tpu_custom_call.1} parent=5 // pred_check
        %p81 = pneg %p80
      $region14: #{tpu_custom_call.1} parent=5 // pred_check_branch
        %83 = sbr.rel (%p81) target = $region16
      $region15: #{tpu_custom_call.1} parent=5 // pred_region
        // Predicated region
        $region17: #{tpu_custom_call.1} parent=15 // pred_check
          %p84 = pneg %p33
        $region18: #{tpu_custom_call.1} parent=15 // pred_check_branch
          %86 = sbr.rel (%p84) target = $region20
        $region19: #{tpu_custom_call.1} parent=15 // pred_region
          %s87 = sand.u32 %s23, 1
          %s88 = scalar_lea.sflag [#allocation3], %s87
          %s89 = sand.u32 %s23, 1
          %s90 = smul.addr %s89, 8
          %s91 = scalar_lea.vmem [#allocation2], %s90
          %s93 = ssub.s32 128, 128
          %94 = vsyncadd %s88, %s93
          %s95 = smul.addr %s13, 128
          %s96 = scalar_lea.hbm %s0, %s95
          %s98 = sshll.u32 %s91, 4
          %s99 = int_to_ptr.vmem [resolvable:$true] %s98
          %101 = dma.hbm_to_vmem [thread:$0]  %s96, 128, %s99, %s88
        $region20: #{tpu_custom_call.1} parent=15 // pred_fallthru
          _
      $region16: #{tpu_custom_call.1} parent=5 // pred_fallthru
        _
      %p102 = scmp.le.s32.totalorder 1, %s13
      %p103 = scmp.lt.s32.totalorder %s13, 3
      %p104 = pnand %p102, %p103
      %p105 = pneg %p104
      // Predicated region
      $region21: #{tpu_custom_call.1} parent=5 // pred_check
        _
      $region22: #{tpu_custom_call.1} parent=5 // pred_check_branch
        %107 = sbr.rel (%p104) target = $region24
      $region23: #{tpu_custom_call.1} parent=5 // pred_region
        %s108 = ssub.s32 %s13, 1
        %s109 = sand.u32 %s26, 1
        %s110 = scalar_lea.sflag [#allocation3], %s109
        %s111 = sand.u32 %s26, 1
        %s112 = smul.addr %s111, 8
        %s113 = scalar_lea.vmem [#allocation2], %s112
        // Predicated region
        $region25: #{tpu_custom_call.1} parent=23 // pred_check
          %p114 = pneg %p39
        $region26: #{tpu_custom_call.1} parent=23 // pred_check_branch
          %116 = sbr.rel (%p114) target = $region28
        $region27: #{tpu_custom_call.1} parent=23 // pred_region
          %117 = dma.done %s110, 128
        $region28: #{tpu_custom_call.1} parent=23 // pred_fallthru
          _
        %s118 = sand.u32 %s26, 1
        %s119 = scalar_lea.sflag [#allocation3], %s118
        %s120 = sand.u32 %s26, 1
        %s121 = smul.addr %s120, 8
        %s122 = scalar_lea.vmem [#allocation2], %s121
        %p123 = pneg %p39
        %p124 = pneg %p36
        %p125 = pneg %p65
        %p126 = pneg %p62
        %s127 = sand.u32 %s52, 1
        %s128 = scalar_lea.sflag [#allocation4], %s127
        %s129 = sand.u32 %s52, 1
        %s130 = smul.addr %s129, 8
        %s131 = scalar_lea.vmem [#allocation5], %s130
        %v132 = vld [vmem:[%s113] sm:$0xff]
        %v133 = vmax.f32 %v132, -1.0
        %v134 = vmin.f32 %v133, 1.0
        %v135 = vand.u32 2147483647, %v134
        %136 = vadd.xlane.f32.xlu0 %v135
        %v137 = vpop.xlane.xlu0 %136
        %v138 = vmul.f32 %v137, 0.027777778
        %vm139 = vcmp.ge.f32.partialorder %v134, 0.0
        %v140 = vsub.f32 0.0, %v138
        %v141 = vsel %vm139, %v138, %v140
        %142 = vst [vmem:[%s131] sm:$0xff] %v141
        %s143 = sand.u32 %s52, 1
        %s144 = scalar_lea.sflag [#allocation4], %s143
        %s145 = sand.u32 %s52, 1
        %s146 = smul.addr %s145, 8
        %s147 = scalar_lea.vmem [#allocation5], %s146
        // Predicated region
        $region29: #{tpu_custom_call.1} parent=23 // pred_check
          %p148 = pneg %p62
        $region30: #{tpu_custom_call.1} parent=23 // pred_check_branch
          %150 = sbr.rel (%p148) target = $region32
        $region31: #{tpu_custom_call.1} parent=23 // pred_region
          %s152 = ssub.s32 128, 128
          %153 = vsyncadd %s144, %s152
          %s154 = smul.addr %s18, 128
          %s155 = scalar_lea.hbm %s1, %s154
          %s157 = sshll.u32 %s147, 4
          %s158 = int_to_ptr.vmem [resolvable:$true] %s157
          %160 = dma.vmem_to_hbm [thread:$0]  %s158, 128, %s155, %s144
        $region32: #{tpu_custom_call.1} parent=23 // pred_fallthru
          _
      $region24: #{tpu_custom_call.1} parent=5 // pred_fallthru
        _
      %p161 = scmp.le.s32.totalorder 2, %s13
      // Predicated region
      $region33: #{tpu_custom_call.1} parent=5 // pred_check
        %p162 = pneg %p161
      $region34: #{tpu_custom_call.1} parent=5 // pred_check_branch
        %164 = sbr.rel (%p162) target = $region36
      $region35: #{tpu_custom_call.1} parent=5 // pred_region
        %s165 = ssub.s32 %s13, 2
        // Predicated region
        $region37: #{tpu_custom_call.1} parent=35 // pred_check
          %p166 = pneg %p68
        $region38: #{tpu_custom_call.1} parent=35 // pred_check_branch
          %168 = sbr.rel (%p166) target = $region40
        $region39: #{tpu_custom_call.1} parent=35 // pred_region
          %s169 = sand.u32 %s53, 1
          %s170 = scalar_lea.sflag [#allocation4], %s169
          %s171 = sand.u32 %s53, 1
          %s172 = smul.addr %s171, 8
          %s173 = scalar_lea.vmem [#allocation5], %s172
          %174 = dma.done %s170, 128
        $region40: #{tpu_custom_call.1} parent=35 // pred_fallthru
          _
      $region36: #{tpu_custom_call.1} parent=5 // pred_fallthru
        _
    $region6: #{tpu_custom_call.1} parent=1 // loop_footer
      %s17 = sadd.s32 1, %s13
    $region7: #{tpu_custom_call.1} parent=1 // loop_footer_branch
      %12 = sbr.rel target = $region3
    $region8: #{tpu_custom_call.1} parent=1 // loop_exit
      _
    %175 = vsyncpa [#allocation3], 1
    %s176 = scalar_lea.sflag [#allocation3], 1
    %177 = vsyncpa %s176, 1
    %178 = vsyncpa [#allocation4], 1
    %s179 = scalar_lea.sflag [#allocation4], 1
    %180 = vsyncpa %s179, 1

</llo_original>
